<compile_context>
chip_gen: v6e
topology: v6e:2x2x1
jax: 0.10.0
libtpu: 0.0.40
codegen_flags: <defaults>
</compile_context>

<pallas_src>
import functools

import jax
import jax.numpy as jnp
from jax.experimental import pallas as pl
from jax.experimental.pallas import tpu as pltpu


_EPS_SQ = 1e-24  # == (F.normalize eps 1e-12) ** 2


def _l2_normalize(x):
    """x / max(||x||_2, 1e-12), computed with an EUP rsqrt."""
    return x * jax.lax.rsqrt(
        jnp.maximum(jnp.sum(x * x, axis=-1, keepdims=True), _EPS_SQ))


def _infonce_lse_kernel(qn_ref, kn_ref, diag_ref, out_ref, m_ref, l_ref, *,
                        n_valid: int, tile_k: int, padded: bool):
    """Online log-sum-exp over key tiles; per-sample CE = LSE - diag."""
    k = pl.program_id(1)

    @pl.when(k == 0)
    def _init():
        m_ref[...] = jnp.full(m_ref.shape, -jnp.inf, dtype=jnp.float32)
        l_ref[...] = jnp.zeros(l_ref.shape, dtype=jnp.float32)

    # Logits tile: bf16 operands (queries already scaled by 1/tau), f32 accum.
    s = jax.lax.dot_general(
        qn_ref[...], kn_ref[...],
        dimension_numbers=(((1,), (1,)), ((), ())),
        preferred_element_type=jnp.float32)                      # (tq, tk)

    if padded:
        # Static-flagged: only emitted when N was padded up to a tile multiple.
        col = k * tile_k + jax.lax.broadcasted_iota(jnp.int32, s.shape, 1)
        s = jnp.where(col < n_valid, s, -jnp.inf)

    # ---- online log-sum-exp over key tiles ----
    m_prev = m_ref[...]
    m_new = jnp.maximum(m_prev, jnp.max(s, axis=-1, keepdims=True))
    alpha = jnp.exp(m_prev - m_new)
    l_ref[...] = alpha * l_ref[...] + jnp.sum(jnp.exp(s - m_new),
                                              axis=-1, keepdims=True)
    m_ref[...] = m_new

    # ---- finalize: per-sample CE = LSE - positive logit ----
    @pl.when(k == pl.num_programs(1) - 1)
    def _finish():
        out_ref[...] = (m_ref[...] + jnp.log(l_ref[...])) - diag_ref[...]


def _round_up(x: int, m: int) -> int:
    return -(-x // m) * m


def _pick_tile(n: int, cap: int) -> int:
    """Tile size: multiple of 8, <= cap, never larger than n rounded to 8."""
    cap = max(8, cap - (cap % 8))
    return min(cap, _round_up(n, 8))


def dropout_sim(cls, exp, *, dropout: float, tau: float, key,
                tile_q: int = 512, tile_k: int = 512):
    """InfoNCE( cls, mask_feature(exp, dropout) ) with temperature tau."""
    assert cls.ndim == 2 and exp.ndim == 2 and cls.shape == exp.shape
    n, d = cls.shape
    keep_prob = 1.0 - float(dropout)
    inv_tau = float(1.0 / tau)

    # -------- O(N*D) precompute in the wrapper (perf review item #1/#3/#4) --
    # Bernoulli keep-mask drawn once (statistically equivalent to torch.bernoulli).
    keep = jax.random.bernoulli(key, keep_prob, exp.shape)
    y = jnp.where(keep, exp.astype(jnp.float32), 0.0)          # mask_feature
    qn = _l2_normalize(cls.astype(jnp.float32))                # F.normalize(cls)
    kn = _l2_normalize(y)                                      # F.normalize(exp_mask)
    diag = jnp.sum(qn * kn, axis=-1, keepdims=True) * inv_tau  # positive logits (f32)
    qn_b = (qn * inv_tau).astype(jnp.bfloat16)                 # 1/tau folded into q
    kn_b = kn.astype(jnp.bfloat16)

    # -------- tiling / padding (keeps grid clean + megacore split on v7x) ---
    tq = _pick_tile(n, tile_q)
    tk = _pick_tile(n, tile_k)
    n_pad_q = _round_up(n, tq)
    n_pad_k = _round_up(n, tk)
    if n_pad_q > n:
        qn_b = jnp.pad(qn_b, ((0, n_pad_q - n), (0, 0)))
        diag = jnp.pad(diag, ((0, n_pad_q - n), (0, 0)))
    if n_pad_k > n:
        kn_b = jnp.pad(kn_b, ((0, n_pad_k - n), (0, 0)))
    grid = (n_pad_q // tq, n_pad_k // tk)

    kernel = functools.partial(_infonce_lse_kernel,
                               n_valid=n, tile_k=tk, padded=(n_pad_k > n))

    per_sample = pl.pallas_call(
        kernel,
        out_shape=jax.ShapeDtypeStruct((n_pad_q, 1), jnp.float32),
        grid=grid,
        in_specs=[
            pl.BlockSpec((tq, d), lambda i, k: (i, 0)),   # qn*1/tau  (bf16, resident per q-tile)
            pl.BlockSpec((tk, d), lambda i, k: (k, 0)),   # kn        (bf16, streamed)
            pl.BlockSpec((tq, 1), lambda i, k: (i, 0)),   # diag      (f32)
        ],
        out_specs=pl.BlockSpec((tq, 1), lambda i, k: (i, 0)),
        scratch_shapes=[
            pltpu.VMEM((tq, 1), jnp.float32),   # running max
            pltpu.VMEM((tq, 1), jnp.float32),   # running sum
        ],
        compiler_params=pltpu.CompilerParams(
            dimension_semantics=("parallel", "arbitrary")),
    )(qn_b, kn_b, diag)

    # reduction='mean' over the N valid per-sample cross-entropy terms
    return jnp.mean(per_sample[:n, 0])


def _dropout_sim_reference(cls, exp, *, dropout, tau, key):
    """Pure-jnp f32 reference using the same Bernoulli mask."""
    keep = jax.random.bernoulli(key, 1.0 - dropout, exp.shape)
    y = jnp.where(keep, exp.astype(jnp.float32), 0.0)
    q = _l2_normalize(cls.astype(jnp.float32))
    p = _l2_normalize(y)
    logits = (q @ p.T) / tau
    lse = jax.nn.logsumexp(logits, axis=-1)
    return jnp.mean(lse - jnp.diagonal(logits))


if __name__ == "__main__":
    # small shapes consistent with the module: N samples, D features
    N, D = 8, 128
    dropout = 0.2
    tau = 0.5

    key = jax.random.PRNGKey(0)
    k_cls, k_exp, k_mask = jax.random.split(key, 3)
    cls = jax.random.normal(k_cls, (N, D), dtype=jnp.float32)
    exp = jax.random.normal(k_exp, (N, D), dtype=jnp.float32)

    loss = dropout_sim(cls, exp, dropout=dropout, tau=tau, key=k_mask)
    loss = jax.block_until_ready(loss)

    ref = _dropout_sim_reference(cls, exp, dropout=dropout, tau=tau, key=k_mask)
    assert loss.shape == () and bool(jnp.isfinite(loss))
    assert abs(float(loss) - float(ref)) < 0.1, (float(loss), float(ref))
    print("KERNEL_OK")
</pallas_src>

<mosaic_0001>
module attributes {stable_mosaic.version = 11 : i64} {
  func.func @_infonce_lse_kernel(%arg0: i32, %arg1: i32, %arg2: memref<8x128xbf16, #tpu.memory_space<vmem>>, %arg3: memref<8x128xbf16, #tpu.memory_space<vmem>>, %arg4: memref<8x1xf32, #tpu.memory_space<vmem>>, %arg5: memref<8x1xf32, #tpu.memory_space<vmem>>, %arg6: memref<8x1xf32, #tpu.memory_space<vmem>>, %arg7: memref<8x1xf32, #tpu.memory_space<vmem>>) attributes {dimension_semantics = [#tpu.dimension_semantics<parallel>, #tpu.dimension_semantics<arbitrary>], iteration_bounds = array<i64: 1, 1>, scalar_prefetch = 0 : i64, scratch_operands = 2 : i64, tpu.core_type = #tpu.core_type<tc>, window_params = [{transform_indices = @transform_0, window_bounds = array<i64: 8, 128>}, {transform_indices = @transform_1, window_bounds = array<i64: 8, 128>}, {transform_indices = @transform_2, window_bounds = array<i64: 8, 1>}, {transform_indices = @transform_3, window_bounds = array<i64: 8, 1>}]} {
    %c0_i32 = arith.constant 0 : i32
    %0 = arith.cmpi eq, %arg1, %c0_i32 : i32
    %1 = arith.extui %0 : i1 to i32
    %c0_i32_0 = arith.constant 0 : i32
    %2 = arith.cmpi ne, %1, %c0_i32_0 : i32
    scf.if %2 {
      %cst_16 = arith.constant 0xFF800000 : f32
      %25 = vector.broadcast %cst_16 : f32 to vector<8x1xf32>
      %c0_17 = arith.constant 0 : index
      %c0_18 = arith.constant 0 : index
      %26 = vector.load %arg6[%c0_17, %c0_18] : memref<8x1xf32, #tpu.memory_space<vmem>>, vector<8x1xf32>
      tpu.vector_store %arg6[%c0_17, %c0_18], %25 {strides = array<i32>} : memref<8x1xf32, #tpu.memory_space<vmem>>, vector<8x1xf32>,
      %cst_19 = arith.constant 0.000000e+00 : f32
      %27 = vector.broadcast %cst_19 : f32 to vector<8x1xf32>
      %c0_20 = arith.constant 0 : index
      %c0_21 = arith.constant 0 : index
      %28 = vector.load %arg7[%c0_20, %c0_21] : memref<8x1xf32, #tpu.memory_space<vmem>>, vector<8x1xf32>
      tpu.vector_store %arg7[%c0_20, %c0_21], %27 {strides = array<i32>} : memref<8x1xf32, #tpu.memory_space<vmem>>, vector<8x1xf32>,
    } else {
    }
    %c0 = arith.constant 0 : index
    %c0_1 = arith.constant 0 : index
    %3 = vector.load %arg2[%c0, %c0_1] : memref<8x128xbf16, #tpu.memory_space<vmem>>, vector<8x128xbf16>
    %c0_2 = arith.constant 0 : index
    %c0_3 = arith.constant 0 : index
    %4 = vector.load %arg3[%c0_2, %c0_3] : memref<8x128xbf16, #tpu.memory_space<vmem>>, vector<8x128xbf16>
    %cst = arith.constant dense<0.000000e+00> : vector<8x8xf32>
    %5 = tpu.matmul %3, %4, %cst {dimension_numbers = #tpu.dot_dimension_numbers<[1], [1], [0], [0], [0, 0, 1, 0], [], []>} : vector<8x128xbf16>, vector<8x128xbf16>, vector<8x8xf32> -> vector<8x8xf32>
    %c0_4 = arith.constant 0 : index
    %c0_5 = arith.constant 0 : index
    %6 = vector.load %arg6[%c0_4, %c0_5] : memref<8x1xf32, #tpu.memory_space<vmem>>, vector<8x1xf32>
    %cst_6 = arith.constant dense<0xFF800000> : vector<8xf32>
    %7 = vector.multi_reduction <maximumf>, %5, %cst_6 [1] : vector<8x8xf32> to vector<8xf32>
    %8 = vector.shape_cast %7 : vector<8xf32> to vector<8x1xf32>
    %9 = arith.maximumf %6, %8 : vector<8x1xf32>
    %10 = arith.subf %6, %9 : vector<8x1xf32>
    %11 = math.exp %10 : vector<8x1xf32>
    %c0_7 = arith.constant 0 : index
    %c0_8 = arith.constant 0 : index
    %12 = vector.load %arg7[%c0_7, %c0_8] : memref<8x1xf32, #tpu.memory_space<vmem>>, vector<8x1xf32>
    %13 = arith.mulf %11, %12 : vector<8x1xf32>
    %14 = vector.broadcast %9 : vector<8x1xf32> to vector<8x8xf32>
    %15 = arith.subf %5, %14 : vector<8x8xf32>
    %16 = math.exp %15 : vector<8x8xf32>
    %cst_9 = arith.constant dense<0.000000e+00> : vector<8xf32>
    %17 = vector.multi_reduction <add>, %16, %cst_9 [1] : vector<8x8xf32> to vector<8xf32>
    %18 = vector.shape_cast %17 : vector<8xf32> to vector<8x1xf32>
    %19 = arith.addf %13, %18 : vector<8x1xf32>
    %c0_10 = arith.constant 0 : index
    %c0_11 = arith.constant 0 : index
    %20 = vector.load %arg7[%c0_10, %c0_11] : memref<8x1xf32, #tpu.memory_space<vmem>>, vector<8x1xf32>
    tpu.vector_store %arg7[%c0_10, %c0_11], %19 {strides = array<i32>} : memref<8x1xf32, #tpu.memory_space<vmem>>, vector<8x1xf32>,
    %c0_12 = arith.constant 0 : index
    %c0_13 = arith.constant 0 : index
    %21 = vector.load %arg6[%c0_12, %c0_13] : memref<8x1xf32, #tpu.memory_space<vmem>>, vector<8x1xf32>
    tpu.vector_store %arg6[%c0_12, %c0_13], %9 {strides = array<i32>} : memref<8x1xf32, #tpu.memory_space<vmem>>, vector<8x1xf32>,
    %c0_i32_14 = arith.constant 0 : i32
    %22 = arith.cmpi eq, %arg1, %c0_i32_14 : i32
    %23 = arith.extui %22 : i1 to i32
    %c0_i32_15 = arith.constant 0 : i32
    %24 = arith.cmpi ne, %23, %c0_i32_15 : i32
    scf.if %24 {
      %c0_16 = arith.constant 0 : index
      %c0_17 = arith.constant 0 : index
      %25 = vector.load %arg6[%c0_16, %c0_17] : memref<8x1xf32, #tpu.memory_space<vmem>>, vector<8x1xf32>
      %c0_18 = arith.constant 0 : index
      %c0_19 = arith.constant 0 : index
      %26 = vector.load %arg7[%c0_18, %c0_19] : memref<8x1xf32, #tpu.memory_space<vmem>>, vector<8x1xf32>
      %27 = math.log %26 : vector<8x1xf32>
      %28 = arith.addf %25, %27 : vector<8x1xf32>
      %c0_20 = arith.constant 0 : index
      %c0_21 = arith.constant 0 : index
      %29 = vector.load %arg4[%c0_20, %c0_21] : memref<8x1xf32, #tpu.memory_space<vmem>>, vector<8x1xf32>
      %30 = arith.subf %28, %29 : vector<8x1xf32>
      %c0_22 = arith.constant 0 : index
      %c0_23 = arith.constant 0 : index
      %31 = vector.load %arg5[%c0_22, %c0_23] : memref<8x1xf32, #tpu.memory_space<vmem>>, vector<8x1xf32>
      tpu.vector_store %arg5[%c0_22, %c0_23], %30 {strides = array<i32>} : memref<8x1xf32, #tpu.memory_space<vmem>>, vector<8x1xf32>,
    } else {
    }
    return
  }
  func.func @transform_0(%arg0: i32, %arg1: i32) -> (i32, i32) {
    %c0_i32 = arith.constant 0 : i32
    %c0_i32_0 = arith.constant 0 : i32
    return %arg0, %c0_i32 : i32, i32
  }
  func.func @transform_1(%arg0: i32, %arg1: i32) -> (i32, i32) {
    %c0_i32 = arith.constant 0 : i32
    %c0_i32_0 = arith.constant 0 : i32
    return %arg1, %c0_i32 : i32, i32
  }
  func.func @transform_2(%arg0: i32, %arg1: i32) -> (i32, i32) {
    %c0_i32 = arith.constant 0 : i32
    %c0_i32_0 = arith.constant 0 : i32
    return %arg0, %c0_i32 : i32, i32
  }
  func.func @transform_3(%arg0: i32, %arg1: i32) -> (i32, i32) {
    %c0_i32 = arith.constant 0 : i32
    %c0_i32_0 = arith.constant 0 : i32
    return %arg0, %c0_i32 : i32, i32
  }
}

</mosaic_0001>

<llo_original>
// kernel: tpu_custom_call.1
$region0: #{tpu_custom_call.1}
  #allocation0 [shape = 'u32[]', space=smem, size = 0x4, offset = 0x4, fixed_abs, tag = 'smem constant byte address 0x4 - core index']
  #allocation1 [shape = 'u32[144,128]{1,0:T(1,128)}', space=vmem, size = 0x12000, scoped, tag = 'internal scratch']
  #allocation2 [shape = 'f32[8,1]{1,0:T(8,128)}', space=vmem, size = 0x1000, scoped, tag = 'scratch operand']
  #allocation3 [shape = 'f32[8,1]{1,0:T(8,128)}', space=vmem, size = 0x1000, scoped, tag = 'scratch operand']
  %s0 = inlined_call_operand.vmem [shape: bf16[8,128], index: 0, kind: input, shape index: {}]
  %s1 = inlined_call_operand.vmem [shape: bf16[8,128], index: 1, kind: input, shape index: {}]
  %s2 = inlined_call_operand.vmem [shape: f32[8,1], index: 2, kind: input, shape index: {}]
  %s3 = inlined_call_operand.vmem [shape: f32[8,1], index: 3, kind: output, shape index: {}]
  %s4 = sld [smem:[#allocation0]]
  $region30: #{tpu_custom_call.1} parent=0
    _
  %s6 = ssub.s32 1, %s4
  %s7 = scalar_select 0, %s6, %s4
  // Predicated region
  $region2: #{tpu_custom_call.1} parent=0 // pred_check
    _
  $region3: #{tpu_custom_call.1} parent=0 // pred_check_branch
    %9 = sbr.rel (0) target = $region5
  $region4: #{tpu_custom_call.1} parent=0 // pred_region
    _
  $region5: #{tpu_custom_call.1} parent=0 // pred_fallthru
    _
  // Predicated region
  $region6: #{tpu_custom_call.1} parent=0 // pred_check
    _
  $region7: #{tpu_custom_call.1} parent=0 // pred_check_branch
    %11 = sbr.rel (0) target = $region9
  $region8: #{tpu_custom_call.1} parent=0 // pred_region
    _
  $region9: #{tpu_custom_call.1} parent=0 // pred_fallthru
    _
  // Predicated region
  $region10: #{tpu_custom_call.1} parent=0 // pred_check
    _
  $region11: #{tpu_custom_call.1} parent=0 // pred_check_branch
    %13 = sbr.rel (0) target = $region13
  $region12: #{tpu_custom_call.1} parent=0 // pred_region
    _
  $region13: #{tpu_custom_call.1} parent=0 // pred_fallthru
    _
  %p15 = scmp.eq.s32.totalorder 0, 0
  // Predicated region
  $region14: #{tpu_custom_call.1} parent=0 // pred_check
    %p16 = pneg %p15
  $region15: #{tpu_custom_call.1} parent=0 // pred_check_branch
    %18 = sbr.rel (%p16) target = $region17
  $region16: #{tpu_custom_call.1} parent=0 // pred_region
    %vm19 = vcmask 7168
    %20 = vst.msk [vmem:[#allocation2] sm:$0xff] %vm19, -inf
    %21 = vst.msk [vmem:[#allocation3] sm:$0xff] %vm19, 0.0
  $region17: #{tpu_custom_call.1} parent=0 // pred_fallthru
    _
  %v22 = vld [vmem:[%s0] sm:$0xf]
  %v23 = vld [vmem:[%s1] sm:$0xf]
  %24 = vmatprep.subr.bf16.mxu0 0
  %25 = vmatpush1.bf16.xpose.msra.mxu0 0
  %26 = vmatprep.subr.bf16.mxu0 0
  %27 = vmatpush1.bf16.xpose.msra.mxu0 0
  %28 = vmatprep.subr.bf16.mxu0 0
  %29 = vmatpush1.bf16.xpose.msra.mxu0 0
  %30 = vmatprep.subr.bf16.mxu0 0
  %31 = vmatpush1.bf16.xpose.msra.mxu0 0
  %32 = vmatprep.subr.bf16.mxu0 0
  %33 = vmatpush1.bf16.xpose.msra.mxu0 0
  %34 = vmatprep.subr.bf16.mxu0 0
  %35 = vmatpush1.bf16.xpose.msra.mxu0 0
  %36 = vmatprep.subr.bf16.mxu0 0
  %37 = vmatpush1.bf16.xpose.msra.mxu0 0
  %38 = vmatprep.subr.bf16.mxu0 0
  %39 = vmatpush1.bf16.xpose.msra.mxu0 %v23
  %40 = vmatprep.subr.bf16.mxu0 0
  %41 = vmatpush2.bf16.xpose.msra.mxu0 0
  %42 = vmatprep.subr.bf16.mxu0 0
  %43 = vmatpush2.bf16.xpose.msra.mxu0 0
  %44 = vmatprep.subr.bf16.mxu0 0
  %45 = vmatpush2.bf16.xpose.msra.mxu0 0
  %46 = vmatprep.subr.bf16.mxu0 0
  %47 = vmatpush2.bf16.xpose.msra.mxu0 0
  %48 = vmatprep.subr.bf16.mxu0 0
  %49 = vmatpush2.bf16.xpose.msra.mxu0 0
  %50 = vmatprep.subr.bf16.mxu0 0
  %51 = vmatpush2.bf16.xpose.msra.mxu0 0
  %52 = vmatprep.subr.bf16.mxu0 0
  %53 = vmatpush2.bf16.xpose.msra.mxu0 0
  %54 = vmatprep.subr.bf16.mxu0 0
  %55 = vmatpush2.bf16.xpose.msra.mxu0 0
  %56 = vmatprep.mubr.bf16.mxu0 0
  %57 = vmatmul.mubr.bf16.gmra.mxu0 %v22
  %v58 = vpop.f32.mrf.mxu0
  %v59 = vadd.f32 0.0, %v58
  %v60 = vpop.f32.mrf.mxu0
  %v61 = vpop.f32.mrf.mxu0
  %v62 = vpop.f32.mrf.mxu0
  %63 = vdwg.mxu0
  %v64 = vld [vmem:[#allocation2] sm:$0xff]
  %vm65 = vcmask 64512
  %v66 = vsel %vm65, %v59, -inf
  %67 = vmax.xlane.f32.xlu0 %v66
  %v68 = vpop.xlane.xlu0 %67
  %v69 = vmax.f32 %v64, %v68
  %v70 = vsub.f32 %v64, %v69
  %v71 = vmul.f32 %v70, 1.442695
  %v72 = vpow.pop %v71
  %v73 = vld [vmem:[#allocation3] sm:$0xff]
  %v74 = vmul.f32 %v72, %v73
  %76 = vset.pattern.permute.xlu0 0
  %77 = vperm.xlu0 %76, %v69
  %v78 = vpop.permute.xlu0 %77
  %v80 = vsub.f32 %v59, %v78
  %v81 = vmul.f32 %v80, 1.442695
  %v82 = vpow.pop %v81
  %v83 = vsel %vm65, %v82, 0.0
  %84 = vadd.xlane.f32.xlu0 %v83
  %v85 = vpop.xlane.xlu0 %84
  %v86 = vadd.f32 %v74, %v85
  %vm87 = vcmask 7168
  %88 = vst.msk [vmem:[#allocation3] sm:$0xff] %vm87, %v86
  %89 = vst.msk [vmem:[#allocation2] sm:$0xff] %vm87, %v69
  // Predicated region
  $region18: #{tpu_custom_call.1} parent=0 // pred_check
    %p90 = pneg %p15
  $region19: #{tpu_custom_call.1} parent=0 // pred_check_branch
    %92 = sbr.rel (%p90) target = $region21
  $region20: #{tpu_custom_call.1} parent=0 // pred_region
    %v93 = vld [vmem:[#allocation2] sm:$0xff]
    %v94 = vld [vmem:[#allocation3] sm:$0xff]
    %v95 = vlog2.pop %v94
    %v96 = vmul.f32 %v95, 0.6931472
    %v97 = vadd.f32 %v93, %v96
    %v98 = vld [vmem:[%s2] sm:$0xff]
    %v99 = vsub.f32 %v97, %v98
    %100 = vst.msk [vmem:[%s3] sm:$0xff] %vm87, %v99
  $region21: #{tpu_custom_call.1} parent=0 // pred_fallthru
    _
  // Predicated region
  $region22: #{tpu_custom_call.1} parent=0 // pred_check
    _
  $region23: #{tpu_custom_call.1} parent=0 // pred_check_branch
    %102 = sbr.rel (0) target = $region25
  $region24: #{tpu_custom_call.1} parent=0 // pred_region
    _
  $region25: #{tpu_custom_call.1} parent=0 // pred_fallthru
    _
  // Predicated region
  $region26: #{tpu_custom_call.1} parent=0 // pred_check
    _
  $region27: #{tpu_custom_call.1} parent=0 // pred_check_branch
    %104 = sbr.rel (0) target = $region29
  $region28: #{tpu_custom_call.1} parent=0 // pred_region
    _
  $region29: #{tpu_custom_call.1} parent=0 // pred_fallthru
    _

</llo_original>
